<compile_context>
chip_gen: v7x
topology: tpu7x:2x2x1
jax: 0.10.0
libtpu: 0.0.40
codegen_flags: <defaults>
</compile_context>

<pallas_src>
import numpy as np

import jax
import jax.numpy as jnp
from jax.experimental import pallas as pl
from jax.experimental.pallas import tpu as pltpu


def _choose_tile_d(d, bytes_per_slice, target_bytes):
    """Largest D-tile (divisor of d, multiple of 8 if < d) within target_bytes."""
    if d * bytes_per_slice <= target_bytes:
        return d
    max_rows = max(8, int(target_bytes // max(bytes_per_slice, 1)))
    cand = (max_rows // 8) * 8
    while cand >= 8:
        if d % cand == 0:
            return cand
        cand -= 8
    return d  # no suitable divisor; fall back to one D-tile per n


def _make_grad3d_kernel(*, D, H, W, tile_d, n_d_tiles, inv_x, inv_y, inv_z):
    HW = H * W
    inv_x = float(inv_x)
    inv_y = float(inv_y)
    inv_z = float(inv_z)

    def kernel(x_ref, maskz_ref, bound_ref, o_ref, carry_ref):
        dt = pl.program_id(1)  # D-tile index (innermost, "arbitrary")

        @pl.when(dt == 0)
        def _init():
            o_ref[...] = jnp.zeros(o_ref.shape, dtype=o_ref.dtype)

        x = x_ref[0].astype(jnp.float32)          # (tile_d, HW), f32 compute
        ax = jnp.abs(x)

        # Zero-padding boundary terms of all three stencils, pre-scaled by the
        # 1/mean denominators.  The lane part is a precomputed constant input;
        # the D part depends on the global d index of each row of this tile.
        i = jax.lax.broadcasted_iota(jnp.int32, (tile_d, 1), 0)
        d_idx = dt * tile_d + i
        bound_row = inv_x * ((d_idx == 0).astype(jnp.float32)
                             + (d_idx == D - 1).astype(jnp.float32))
        s = jnp.sum(ax * (bound_ref[...] + bound_row))

        # Interior |x[w] - x[w-1]| along W: lane-shift-by-1 difference with a
        # static mask (already scaled by 1/cnt_z) killing W-boundary pairs.
        if W > 1:
            s = s + jnp.sum(jnp.abs(x[:, 1:] - x[:, :-1]) * maskz_ref[...])

        # Interior |x[h] - x[h-1]| along H: lane-shift-by-W difference; every
        # pair is valid (same w, adjacent h), so no mask is needed.
        if H > 1:
            s = s + inv_y * jnp.sum(jnp.abs(x[:, W:] - x[:, :-W]))

        # Interior |x[d] - x[d-1]| along D: row-shifted difference inside the
        # tile, plus the cross-tile pair against the carried previous row.
        if D > 1:
            if tile_d > 1:
                s = s + inv_x * jnp.sum(jnp.abs(x[1:, :] - x[:-1, :]))
            if n_d_tiles > 1:
                cross = jnp.sum(jnp.abs(x[0:1, :] - carry_ref[...]))
                s = s + inv_x * jnp.where(dt > 0, cross, 0.0)
                carry_ref[...] = x[tile_d - 1:tile_d, :]

        # Accumulate this tile's partial into lane 0 of the per-n accumulator
        # block; HBM write-back happens automatically when n changes.
        lane = jax.lax.broadcasted_iota(jnp.int32, o_ref.shape, 2)
        o_ref[...] = o_ref[...] + jnp.where(lane == 0, s, 0.0)

    return kernel


def get_grad3d_loss(gen_frames, *, max_tile_bytes=2 * 1024 * 1024):
    """gen_frames: (N, 1, D, H, W) (PyTorch NCDHW, any float dtype). Scalar loss."""
    N, C, D, H, W = gen_frames.shape
    assert C == 1, "conv3d weights have in_channels == 1"
    HW = H * W
    assert HW >= 2, "H*W must be at least 2"

    # Lane-dense view (N, D, H*W); keep the native dtype (cast inside kernel).
    x = gen_frames.reshape(N, D, HW)

    # 1 / mean denominators of the three padded conv outputs.
    inv_x = 1.0 / (N * (D + 1) * H * W)
    inv_y = 1.0 / (N * D * (H + 1) * W)
    inv_z = 1.0 / (N * D * H * (W + 1))

    # Static lane masks (host-side; tiny constant inputs, reused every step).
    jj = np.arange(HW)
    wj = jj % W
    hj = jj // W
    bound_lane = (inv_z * ((wj == 0).astype(np.float32) + (wj == W - 1).astype(np.float32))
                  + inv_y * ((hj == 0).astype(np.float32) + (hj == H - 1).astype(np.float32)))
    bound_lane = jnp.asarray(bound_lane.reshape(1, HW), dtype=jnp.float32)
    # Column j of x[:, 1:] - x[:, :-1] is the pair (j, j+1); it is a genuine
    # within-W neighbour pair iff (j + 1) % W != 0.
    zvalid = ((np.arange(1, HW) % W) != 0).astype(np.float32)
    maskz = jnp.asarray((inv_z * zvalid).reshape(1, HW - 1), dtype=jnp.float32)

    bytes_per_slice = HW * gen_frames.dtype.itemsize
    tile_d = _choose_tile_d(D, bytes_per_slice, max_tile_bytes)
    n_d_tiles = D // tile_d

    kernel = _make_grad3d_kernel(
        D=D, H=H, W=W, tile_d=tile_d, n_d_tiles=n_d_tiles,
        inv_x=inv_x, inv_y=inv_y, inv_z=inv_z)

    partials = pl.pallas_call(
        kernel,
        out_shape=jax.ShapeDtypeStruct((N, 1, 128), jnp.float32),
        grid_spec=pltpu.PrefetchScalarGridSpec(
            num_scalar_prefetch=0,
            grid=(N, n_d_tiles),
            in_specs=[
                pl.BlockSpec((1, tile_d, HW), lambda n, dt: (n, dt, 0)),
                pl.BlockSpec((1, HW - 1), lambda n, dt: (0, 0)),
                pl.BlockSpec((1, HW), lambda n, dt: (0, 0)),
            ],
            out_specs=pl.BlockSpec((1, 1, 128), lambda n, dt: (n, 0, 0)),
            scratch_shapes=[pltpu.VMEM((1, HW), jnp.float32)],
        ),
        compiler_params=pltpu.CompilerParams(
            dimension_semantics=("parallel", "arbitrary"),
            vmem_limit_bytes=32 * 1024 * 1024,
        ),
    )(x, maskz, bound_lane)

    # Tiny final combine: each n contributed one scalar in lane 0.
    return jnp.sum(partials)


def _reference_loss(x):
    """Pure-JAX reference mirroring F.conv3d with padding and [-1,1] stencils."""
    pad_d = jnp.pad(x, ((0, 0), (0, 0), (1, 1), (0, 0), (0, 0)))
    pad_h = jnp.pad(x, ((0, 0), (0, 0), (0, 0), (1, 1), (0, 0)))
    pad_w = jnp.pad(x, ((0, 0), (0, 0), (0, 0), (0, 0), (1, 1)))
    gd = jnp.mean(jnp.abs(pad_d[:, :, 1:, :, :] - pad_d[:, :, :-1, :, :]))
    gh = jnp.mean(jnp.abs(pad_h[:, :, :, 1:, :] - pad_h[:, :, :, :-1, :]))
    gw = jnp.mean(jnp.abs(pad_w[:, :, :, :, 1:] - pad_w[:, :, :, :, :-1]))
    return gd + gh + gw


if __name__ == "__main__":
    key = jax.random.PRNGKey(0)
    k1, k2 = jax.random.split(key)

    # Test 1: f32 input, single D-tile per n (N=2, C=1, D=8, H=W=16).
    x1 = jax.random.normal(k1, (2, 1, 8, 16, 16), dtype=jnp.float32)
    out1 = jax.block_until_ready(get_grad3d_loss(x1))
    ref1 = jax.block_until_ready(_reference_loss(x1))
    assert jnp.allclose(out1, ref1, rtol=1e-5, atol=1e-6), (out1, ref1)

    # Test 2: force D tiling (tile_d=8 < D=16) to exercise the cross-tile carry.
    x2 = jax.random.normal(k2, (2, 1, 16, 16, 16), dtype=jnp.float32)
    out2 = jax.block_until_ready(get_grad3d_loss(x2, max_tile_bytes=8 * 1024))
    ref2 = jax.block_until_ready(_reference_loss(x2))
    assert jnp.allclose(out2, ref2, rtol=1e-5, atol=1e-6), (out2, ref2)

    # Test 3: bf16 input streamed natively, cast to f32 inside the kernel.
    x3 = x1.astype(jnp.bfloat16)
    out3 = jax.block_until_ready(get_grad3d_loss(x3))
    ref3 = jax.block_until_ready(_reference_loss(x3.astype(jnp.float32)))
    assert jnp.allclose(out3, ref3, rtol=1e-4, atol=1e-5), (out3, ref3)

    print("KERNEL_OK")
</pallas_src>

<mosaic_0001>
module attributes {stable_mosaic.version = 11 : i64} {
  func.func @kernel(%arg0: i32, %arg1: i32, %arg2: memref<1x8x256xf32, #tpu.memory_space<vmem>>, %arg3: memref<1x255xf32, #tpu.memory_space<vmem>>, %arg4: memref<1x256xf32, #tpu.memory_space<vmem>>, %arg5: memref<1x1x128xf32, #tpu.memory_space<vmem>>, %arg6: memref<1x256xf32, #tpu.memory_space<vmem>>) attributes {dimension_semantics = [#tpu.dimension_semantics<parallel>, #tpu.dimension_semantics<arbitrary>], iteration_bounds = array<i64: 2, 1>, scalar_prefetch = 0 : i64, scratch_operands = 1 : i64, tpu.core_type = #tpu.core_type<tc>, window_params = [{transform_indices = @transform_0, window_bounds = array<i64: 1, 8, 256>}, {pipeline_mode = #tpu.pipeline_mode<synchronous>, transform_indices = @transform_1, window_bounds = array<i64: 1, 255>}, {pipeline_mode = #tpu.pipeline_mode<synchronous>, transform_indices = @transform_2, window_bounds = array<i64: 1, 256>}, {transform_indices = @transform_3, window_bounds = array<i64: 1, 1, 128>}]} {
    %c0_i32 = arith.constant 0 : i32
    %0 = arith.cmpi eq, %arg1, %c0_i32 : i32
    %1 = arith.extui %0 : i1 to i32
    %c0_i32_0 = arith.constant 0 : i32
    %2 = arith.cmpi ne, %1, %c0_i32_0 : i32
    scf.if %2 {
      %cst_22 = arith.constant 0.000000e+00 : f32
      %71 = vector.broadcast %cst_22 : f32 to vector<1x1x128xf32>
      %c0_23 = arith.constant 0 : index
      %c0_24 = arith.constant 0 : index
      %c0_25 = arith.constant 0 : index
      %72 = vector.load %arg5[%c0_23, %c0_24, %c0_25] : memref<1x1x128xf32, #tpu.memory_space<vmem>>, vector<1x1x128xf32>
      tpu.vector_store %arg5[%c0_23, %c0_24, %c0_25], %71 {strides = array<i32>} : memref<1x1x128xf32, #tpu.memory_space<vmem>>, vector<1x1x128xf32>,
    } else {
    }
    %c0 = arith.constant 0 : index
    %c0_1 = arith.constant 0 : index
    %c0_2 = arith.constant 0 : index
    %3 = vector.load %arg2[%c0, %c0_1, %c0_2] : memref<1x8x256xf32, #tpu.memory_space<vmem>>, vector<1x8x256xf32>
    %4 = vector.shape_cast %3 : vector<1x8x256xf32> to vector<8x256xf32>
    %5 = math.absf %4 : vector<8x256xf32>
    %6 = tpu.iota {dimensions = array<i32: 0>} : vector<8x1xi32>
    %c8_i32 = arith.constant 8 : i32
    %7 = arith.muli %arg1, %c8_i32 : i32
    %8 = vector.broadcast %7 : i32 to vector<8x1xi32>
    %9 = arith.addi %8, %6 : vector<8x1xi32>
    %c0_i32_3 = arith.constant 0 : i32
    %10 = vector.broadcast %c0_i32_3 : i32 to vector<8x1xi32>
    %11 = arith.cmpi eq, %9, %10 : vector<8x1xi32>
    %12 = arith.extui %11 : vector<8x1xi1> to vector<8x1xi32>
    %13 = arith.sitofp %12 : vector<8x1xi32> to vector<8x1xf32>
    %c7_i32 = arith.constant 7 : i32
    %14 = vector.broadcast %c7_i32 : i32 to vector<8x1xi32>
    %15 = arith.cmpi eq, %9, %14 : vector<8x1xi32>
    %16 = arith.extui %15 : vector<8x1xi1> to vector<8x1xi32>
    %17 = arith.sitofp %16 : vector<8x1xi32> to vector<8x1xf32>
    %18 = arith.addf %13, %17 : vector<8x1xf32>
    %cst = arith.constant 2.17013891E-4 : f32
    %19 = vector.broadcast %cst : f32 to vector<8x1xf32>
    %20 = arith.mulf %19, %18 : vector<8x1xf32>
    %c0_4 = arith.constant 0 : index
    %c0_5 = arith.constant 0 : index
    %21 = vector.load %arg4[%c0_4, %c0_5] : memref<1x256xf32, #tpu.memory_space<vmem>>, vector<1x256xf32>
    %22 = vector.broadcast %21 : vector<1x256xf32> to vector<8x256xf32>
    %23 = vector.broadcast %20 : vector<8x1xf32> to vector<8x256xf32>
    %24 = arith.addf %22, %23 : vector<8x256xf32>
    %25 = arith.mulf %5, %24 : vector<8x256xf32>
    %26 = vector.shape_cast %25 : vector<8x256xf32> to vector<1x8x256xf32>
    %cst_6 = arith.constant dense<0.000000e+00> : vector<1xf32>
    %27 = vector.multi_reduction <add>, %26, %cst_6 [1, 2] : vector<1x8x256xf32> to vector<1xf32>
    %28 = vector.shape_cast %27 : vector<1xf32> to vector<1x1x1xf32>
    %29 = vector.extract %28[0, 0, 0] : f32 from vector<1x1x1xf32>
    %30 = vector.extract_strided_slice %4 {offsets = [0, 1], sizes = [8, 255], strides = [1, 1]} : vector<8x256xf32> to vector<8x255xf32>
    %31 = vector.extract_strided_slice %4 {offsets = [0, 0], sizes = [8, 255], strides = [1, 1]} : vector<8x256xf32> to vector<8x255xf32>
    %32 = arith.subf %30, %31 : vector<8x255xf32>
    %33 = math.absf %32 : vector<8x255xf32>
    %c0_7 = arith.constant 0 : index
    %c0_8 = arith.constant 0 : index
    %34 = vector.load %arg3[%c0_7, %c0_8] : memref<1x255xf32, #tpu.memory_space<vmem>>, vector<1x255xf32>
    %35 = vector.broadcast %34 : vector<1x255xf32> to vector<8x255xf32>
    %36 = arith.mulf %33, %35 : vector<8x255xf32>
    %37 = vector.shape_cast %36 : vector<8x255xf32> to vector<1x8x255xf32>
    %cst_9 = arith.constant dense<0.000000e+00> : vector<1xf32>
    %38 = vector.multi_reduction <add>, %37, %cst_9 [1, 2] : vector<1x8x255xf32> to vector<1xf32>
    %39 = vector.shape_cast %38 : vector<1xf32> to vector<1x1x1xf32>
    %40 = vector.extract %39[0, 0, 0] : f32 from vector<1x1x1xf32>
    %41 = arith.addf %29, %40 : f32
    %42 = vector.extract_strided_slice %4 {offsets = [0, 16], sizes = [8, 240], strides = [1, 1]} : vector<8x256xf32> to vector<8x240xf32>
    %43 = vector.extract_strided_slice %4 {offsets = [0, 0], sizes = [8, 240], strides = [1, 1]} : vector<8x256xf32> to vector<8x240xf32>
    %44 = arith.subf %42, %43 : vector<8x240xf32>
    %45 = math.absf %44 : vector<8x240xf32>
    %46 = vector.shape_cast %45 : vector<8x240xf32> to vector<1x8x240xf32>
    %cst_10 = arith.constant dense<0.000000e+00> : vector<1xf32>
    %47 = vector.multi_reduction <add>, %46, %cst_10 [1, 2] : vector<1x8x240xf32> to vector<1xf32>
    %48 = vector.shape_cast %47 : vector<1xf32> to vector<1x1x1xf32>
    %49 = vector.extract %48[0, 0, 0] : f32 from vector<1x1x1xf32>
    %cst_11 = arith.constant 2.29779413E-4 : f32
    %50 = arith.mulf %cst_11, %49 : f32
    %51 = arith.addf %41, %50 : f32
    %52 = vector.extract_strided_slice %4 {offsets = [1, 0], sizes = [7, 256], strides = [1, 1]} : vector<8x256xf32> to vector<7x256xf32>
    %53 = vector.extract_strided_slice %4 {offsets = [0, 0], sizes = [7, 256], strides = [1, 1]} : vector<8x256xf32> to vector<7x256xf32>
    %54 = arith.subf %52, %53 : vector<7x256xf32>
    %55 = math.absf %54 : vector<7x256xf32>
    %56 = vector.shape_cast %55 : vector<7x256xf32> to vector<1x7x256xf32>
    %cst_12 = arith.constant dense<0.000000e+00> : vector<1xf32>
    %57 = vector.multi_reduction <add>, %56, %cst_12 [1, 2] : vector<1x7x256xf32> to vector<1xf32>
    %58 = vector.shape_cast %57 : vector<1xf32> to vector<1x1x1xf32>
    %59 = vector.extract %58[0, 0, 0] : f32 from vector<1x1x1xf32>
    %cst_13 = arith.constant 2.17013891E-4 : f32
    %60 = arith.mulf %cst_13, %59 : f32
    %61 = arith.addf %51, %60 : f32
    %62 = tpu.iota {dimensions = array<i32: 2>} : vector<1x1x128xi32>
    %c0_14 = arith.constant 0 : index
    %c0_15 = arith.constant 0 : index
    %c0_16 = arith.constant 0 : index
    %63 = vector.load %arg5[%c0_14, %c0_15, %c0_16] : memref<1x1x128xf32, #tpu.memory_space<vmem>>, vector<1x1x128xf32>
    %c0_i32_17 = arith.constant 0 : i32
    %64 = vector.broadcast %c0_i32_17 : i32 to vector<1x1x128xi32>
    %65 = arith.cmpi eq, %62, %64 : vector<1x1x128xi32>
    %cst_18 = arith.constant 0.000000e+00 : f32
    %66 = vector.broadcast %61 : f32 to vector<1x1x128xf32>
    %67 = vector.broadcast %cst_18 : f32 to vector<1x1x128xf32>
    %68 = arith.select %65, %66, %67 : vector<1x1x128xi1>, vector<1x1x128xf32>
    %69 = arith.addf %63, %68 : vector<1x1x128xf32>
    %c0_19 = arith.constant 0 : index
    %c0_20 = arith.constant 0 : index
    %c0_21 = arith.constant 0 : index
    %70 = vector.load %arg5[%c0_19, %c0_20, %c0_21] : memref<1x1x128xf32, #tpu.memory_space<vmem>>, vector<1x1x128xf32>
    tpu.vector_store %arg5[%c0_19, %c0_20, %c0_21], %69 {strides = array<i32>} : memref<1x1x128xf32, #tpu.memory_space<vmem>>, vector<1x1x128xf32>,
    return
  }
  func.func @transform_0(%arg0: i32, %arg1: i32) -> (i32, i32, i32) {
    %c0_i32 = arith.constant 0 : i32
    %c0_i32_0 = arith.constant 0 : i32
    return %arg0, %arg1, %c0_i32 : i32, i32, i32
  }
  func.func @transform_1(%arg0: i32, %arg1: i32) -> (i32, i32) {
    %c0_i32 = arith.constant 0 : i32
    %c0_i32_0 = arith.constant 0 : i32
    %c0_i32_1 = arith.constant 0 : i32
    return %c0_i32, %c0_i32_0 : i32, i32
  }
  func.func @transform_2(%arg0: i32, %arg1: i32) -> (i32, i32) {
    %c0_i32 = arith.constant 0 : i32
    %c0_i32_0 = arith.constant 0 : i32
    %c0_i32_1 = arith.constant 0 : i32
    return %c0_i32, %c0_i32_0 : i32, i32
  }
  func.func @transform_3(%arg0: i32, %arg1: i32) -> (i32, i32, i32) {
    %c0_i32 = arith.constant 0 : i32
    %c0_i32_0 = arith.constant 0 : i32
    %c0_i32_1 = arith.constant 0 : i32
    return %arg0, %c0_i32, %c0_i32_0 : i32, i32, i32
  }
}

</mosaic_0001>

<llo_original>
// kernel: tpu_custom_call.1
$region0: #{tpu_custom_call.1}
  #allocation0 [shape = 'u32[]', space=smem, size = 0x4, offset = 0x4, fixed_abs, tag = 'smem constant byte address 0x4 - core index']
  #allocation1 [shape = 'u32[144,128]{1,0:T(1,128)}', space=vmem, size = 0x12000, scoped, tag = 'internal scratch']
  #allocation2 [shape = 'f32[1,256]{1,0:T(1,128)}', space=vmem, size = 0x400, scoped, tag = 'scratch operand']
  %s0 = inlined_call_operand.hbm [shape: f32[2,8,256], index: 0, kind: input, shape index: {}]
  %s1 = inlined_call_operand.vmem [shape: f32[1,255], index: 1, kind: input, shape index: {}]
  %s2 = inlined_call_operand.vmem [shape: f32[1,256], index: 2, kind: input, shape index: {}]
  %s3 = inlined_call_operand.hbm [shape: f32[2,1,128], index: 3, kind: output, shape index: {}]
  %s4 = sld [smem:[#allocation0]]
  $region53: #{tpu_custom_call.1} parent=0
    _
  %s6 = ssub.s32 1, %s4
  %s7 = scalar_select 0, %s6, %s4
  $region1: #{tpu_custom_call.1} parent=0
    #allocation3 [shape = 'u8[16384]{0}', space=vmem, size = 0x4000, scoped, tag = 'input window, operand 0']
    #allocation4 [shape = 's32[2]{0}', space=sflag, size = 0x8, scoped, tag = 'scoped memory for tpu_custom_call.1']
    #allocation5 [shape = 's32[2]{0}', space=sflag, size = 0x8, scoped, tag = 'scoped memory for tpu_custom_call.1']
    #allocation6 [shape = 'u8[1024]{0}', space=vmem, size = 0x400, scoped, tag = 'output window, operand 0']
    %8 = vsyncpa [#allocation4], 0
    %s9 = scalar_lea.sflag [#allocation4], 1
    %10 = vsyncpa %s9, 0
    %11 = vsyncpa [#allocation5], 0
    %s12 = scalar_lea.sflag [#allocation5], 1
    %13 = vsyncpa %s12, 0
    loop: start=0, step=1, limit=4
    $region2: #{tpu_custom_call.1} parent=1 // loop_pre_header
      _
    $region3: #{tpu_custom_call.1} parent=1 // loop_header
      %s15 = sphi 0, %s19
      %p16 = scmp.ge.s32.totalorder %s15, 4
      %s22 = sphi 0, %s34
      %s23 = sphi 0, %s30
      %s24 = sphi 0, %s22
      %s25 = sphi 0, %s23
      %s26 = sphi 0, %s24
      %s27 = sphi 0, %s25
      %s39 = sphi 0, %s41
      %s42 = sphi 0, %s39
      %s43 = sphi 0, %s42
      %s59 = sphi 0, %s43
      %s63 = sphi 0, %s63
      %s65 = sphi 0, %s63
      %s66 = sphi 0, %s65
      %s80 = sphi 0, %s66
      %s84 = sphi 0, %s84
      %s86 = sphi 0, %s84
      %s87 = sphi 0, %s86
      %s101 = sphi 0, %s87
      %s107 = sphi 0, %s109
      %s110 = sphi 0, %s107
      %s111 = sphi 0, %s110
      %s127 = sphi 0, %s111
    $region4: #{tpu_custom_call.1} parent=1 // loop_header_branch
      %18 = sbr.rel (%p16) target = $region8
    $region5: #{tpu_custom_call.1} parent=1 // loop_body
      %s20 = ssub.s32 %s15, 1
      %s21 = ssub.s32 %s15, 2
      %s28 = sadd.s32 1, %s23
      %p29 = scmp.ge.s32.totalorder %s28, 1
      %s30 = scalar_select %p29, 0, %s28
      %s31 = sadd.s32 1, %s22
      %s32 = scalar_select %p29, %s31, %s22
      %p33 = scmp.ge.s32.totalorder %s32, 2
      %s34 = scalar_select %p33, 0, %s32
      %s35 = ssub.s32 %s22, %s34
      %s36 = ssub.s32 %s23, %s30
      %s37 = sor.u32 %s35, %s36
      %p38 = scmp.eq.s32.totalorder %s37, 0
      %s40 = sadd.s32 %s39, 1
      %s41 = scalar_select %p38, %s39, %s40
      %p44 = pneg %p38
      %p45 = scmp.eq.s32.totalorder %s15, 1
      %p46 = por %p44, %p45
      %p47 = scmp.ne.s32.totalorder %s39, %s42
      %p48 = scmp.eq.s32.totalorder %s15, 0
      %p49 = por %p47, %p48
      %p50 = scmp.ne.s32.totalorder %s39, %s42
      %p51 = scmp.eq.s32.totalorder %s20, 1
      %p52 = por %p50, %p51
      %p53 = scmp.ne.s32.totalorder %s42, %s43
      %p54 = scmp.eq.s32.totalorder %s20, 0
      %p55 = por %p53, %p54
      %p56 = scmp.ne.s32.totalorder %s42, %s43
      %p57 = scmp.eq.s32.totalorder %s21, 1
      %p58 = por %p56, %p57
      %p60 = scmp.ne.s32.totalorder %s43, %s59
      %p61 = scmp.eq.s32.totalorder %s21, 0
      %p62 = por %p60, %p61
      %s64 = sadd.s32 %s63, 1
      %p67 = scmp.eq.s32.totalorder %s15, 1
      %p68 = scmp.ne.s32.totalorder %s63, %s65
      %p69 = scmp.eq.s32.totalorder %s15, 0
      %p70 = por %p68, %p69
      %p71 = scmp.ne.s32.totalorder %s63, %s65
      %p72 = scmp.eq.s32.totalorder %s20, 1
      %p73 = por %p71, %p72
      %p74 = scmp.ne.s32.totalorder %s65, %s66
      %p75 = scmp.eq.s32.totalorder %s20, 0
      %p76 = por %p74, %p75
      %p77 = scmp.ne.s32.totalorder %s65, %s66
      %p78 = scmp.eq.s32.totalorder %s21, 1
      %p79 = por %p77, %p78
      %p81 = scmp.ne.s32.totalorder %s66, %s80
      %p82 = scmp.eq.s32.totalorder %s21, 0
      %p83 = por %p81, %p82
      %s85 = sadd.s32 %s84, 1
      %p88 = scmp.eq.s32.totalorder %s15, 1
      %p89 = scmp.ne.s32.totalorder %s84, %s86
      %p90 = scmp.eq.s32.totalorder %s15, 0
      %p91 = por %p89, %p90
      %p92 = scmp.ne.s32.totalorder %s84, %s86
      %p93 = scmp.eq.s32.totalorder %s20, 1
      %p94 = por %p92, %p93
      %p95 = scmp.ne.s32.totalorder %s86, %s87
      %p96 = scmp.eq.s32.totalorder %s20, 0
      %p97 = por %p95, %p96
      %p98 = scmp.ne.s32.totalorder %s86, %s87
      %p99 = scmp.eq.s32.totalorder %s21, 1
      %p100 = por %p98, %p99
      %p102 = scmp.ne.s32.totalorder %s87, %s101
      %p103 = scmp.eq.s32.totalorder %s21, 0
      %p104 = por %p102, %p103
      %s105 = ssub.s32 %s22, %s34
      %p106 = scmp.eq.s32.totalorder %s105, 0
      %s108 = sadd.s32 %s107, 1
      %s109 = scalar_select %p106, %s107, %s108
      %p112 = pneg %p106
      %p113 = scmp.eq.s32.totalorder %s15, 1
      %p114 = por %p112, %p113
      %p115 = scmp.ne.s32.totalorder %s107, %s110
      %p116 = scmp.eq.s32.totalorder %s15, 0
      %p117 = por %p115, %p116
      %p118 = scmp.ne.s32.totalorder %s107, %s110
      %p119 = scmp.eq.s32.totalorder %s20, 1
      %p120 = por %p118, %p119
      %p121 = scmp.ne.s32.totalorder %s110, %s111
      %p122 = scmp.eq.s32.totalorder %s20, 0
      %p123 = por %p121, %p122
      %p124 = scmp.ne.s32.totalorder %s110, %s111
      %p125 = scmp.eq.s32.totalorder %s21, 1
      %p126 = por %p124, %p125
      %p128 = scmp.ne.s32.totalorder %s111, %s127
      %p129 = scmp.eq.s32.totalorder %s21, 0
      %p130 = por %p128, %p129
      %p131 = scmp.le.s32.totalorder 1, %s15
      %p132 = scmp.lt.s32.totalorder %s15, 3
      %p133 = pnand %p131, %p132
      %p134 = pneg %p133
      // Predicated region
      $region9: #{tpu_custom_call.1} parent=5 // pred_check
        _
      $region10: #{tpu_custom_call.1} parent=5 // pred_check_branch
        %136 = sbr.rel (%p133) target = $region12
      $region11: #{tpu_custom_call.1} parent=5 // pred_region
        %s137 = ssub.s32 %s15, 1
        // Predicated region
        $region13: #{tpu_custom_call.1} parent=11 // pred_check
          %p138 = pneg %p76
        $region14: #{tpu_custom_call.1} parent=11 // pred_check_branch
          %140 = sbr.rel (%p138) target = $region16
        $region15: #{tpu_custom_call.1} parent=11 // pred_region
          _
        $region16: #{tpu_custom_call.1} parent=11 // pred_fallthru
          _
        // Predicated region
        $region17: #{tpu_custom_call.1} parent=11 // pred_check
          %p141 = pneg %p97
        $region18: #{tpu_custom_call.1} parent=11 // pred_check_branch
          %143 = sbr.rel (%p141) target = $region20
        $region19: #{tpu_custom_call.1} parent=11 // pred_region
          _
        $region20: #{tpu_custom_call.1} parent=11 // pred_fallthru
          _
      $region12: #{tpu_custom_call.1} parent=5 // pred_fallthru
        _
      %p144 = scmp.lt.s32.totalorder %s15, 2
      // Predicated region
      $region21: #{tpu_custom_call.1} parent=5 // pred_check
        %p145 = pneg %p144
      $region22: #{tpu_custom_call.1} parent=5 // pred_check_branch
        %147 = sbr.rel (%p145) target = $region24
      $region23: #{tpu_custom_call.1} parent=5 // pred_region
        // Predicated region
        $region25: #{tpu_custom_call.1} parent=23 // pred_check
          %p148 = pneg %p49
        $region26: #{tpu_custom_call.1} parent=23 // pred_check_branch
          %150 = sbr.rel (%p148) target = $region28
        $region27: #{tpu_custom_call.1} parent=23 // pred_region
          %s151 = sand.u32 %s39, 1
          %s152 = scalar_lea.sflag [#allocation4], %s151
          %s153 = sand.u32 %s39, 1
          %s154 = smul.addr %s153, 16
          %s155 = scalar_lea.vmem [#allocation3], %s154
          %s157 = ssub.s32 256, 256
          %158 = vsyncadd %s152, %s157
          %s159 = smul.addr %s23, 2
          %s160 = smul.addr %s22, 2
          %s161 = sadd.s32 %s159, %s160
          %s162 = smul.addr %s161, 128
          %s163 = scalar_lea.hbm %s0, %s162
          %s165 = sshll.u32 %s155, 4
          %s166 = int_to_ptr.vmem [resolvable:$true] %s165
          %168 = dma.hbm_to_vmem [thread:$0]  %s163, 256, %s166, %s152
        $region28: #{tpu_custom_call.1} parent=23 // pred_fallthru
          _
      $region24: #{tpu_custom_call.1} parent=5 // pred_fallthru
        _
      %p169 = scmp.le.s32.totalorder 1, %s15
      %p170 = scmp.lt.s32.totalorder %s15, 3
      %p171 = pnand %p169, %p170
      %p172 = pneg %p171
      // Predicated region
      $region29: #{tpu_custom_call.1} parent=5 // pred_check
        _
      $region30: #{tpu_custom_call.1} parent=5 // pred_check_branch
        %174 = sbr.rel (%p171) target = $region32
      $region31: #{tpu_custom_call.1} parent=5 // pred_region
        %s175 = ssub.s32 %s15, 1
        %s176 = sand.u32 %s42, 1
        %s177 = scalar_lea.sflag [#allocation4], %s176
        %s178 = sand.u32 %s42, 1
        %s179 = smul.addr %s178, 16
        %s180 = scalar_lea.vmem [#allocation3], %s179
        // Predicated region
        $region33: #{tpu_custom_call.1} parent=31 // pred_check
          %p181 = pneg %p55
        $region34: #{tpu_custom_call.1} parent=31 // pred_check_branch
          %183 = sbr.rel (%p181) target = $region36
        $region35: #{tpu_custom_call.1} parent=31 // pred_region
          %184 = dma.done %s177, 256
        $region36: #{tpu_custom_call.1} parent=31 // pred_fallthru
          _
        %s185 = sand.u32 %s42, 1
        %s186 = scalar_lea.sflag [#allocation4], %s185
        %s187 = sand.u32 %s42, 1
        %s188 = smul.addr %s187, 16
        %s189 = scalar_lea.vmem [#allocation3], %s188
        %p190 = pneg %p55
        %p191 = pneg %p52
        %p192 = pneg %p76
        %p193 = pneg %p73
        %p194 = pneg %p97
        %p195 = pneg %p94
        %p196 = pneg %p123
        %p197 = pneg %p120
        %s198 = sand.u32 %s110, 1
        %s199 = scalar_lea.sflag [#allocation5], %s198
        %s200 = sand.u32 %s110, 1
        %s201 = scalar_lea.vmem [#allocation6], %s200
        %p202 = scmp.eq.s32.totalorder %s25, 0
        // Predicated region
        $region37: #{tpu_custom_call.1} parent=31 // pred_check
          %p203 = pneg %p202
        $region38: #{tpu_custom_call.1} parent=31 // pred_check_branch
          %205 = sbr.rel (%p203) target = $region40
        $region39: #{tpu_custom_call.1} parent=31 // pred_region
          %206 = vst [vmem:[%s201] sm:$0x1] 0.0
        $region40: #{tpu_custom_call.1} parent=31 // pred_fallthru
          _
        %v207 = vld [vmem:[%s180] sm:$0xff]
        %v208 = vld [vmem:[%s180 + $0x8] sm:$0xff]
        %v209 = vand.u32 2147483647, %v207
        %v210 = vand.u32 2147483647, %v208
        %v211 = vlaneseq
        %v212 = vshrl.u32 %v211, 7
        %s213 = smul.u32 %s25, 8
        %v214 = vstv %s213
        %v215 = vadd.s32 %v214, %v212
        %vm216 = vcmp.eq.s32.totalorder %v215, 0
        %v217 = vsel %vm216, 1, 0
        %v218 = vcvt.s32.f32 %v217
        %vm219 = vcmp.eq.s32.totalorder %v215, 7
        %v220 = vsel %vm219, 1, 0
        %v221 = vcvt.s32.f32 %v220
        %v222 = vadd.f32 %v218, %v221
        %v223 = vmul.f32 %v222, 0.00021701389
        %v224 = vld [vmem:[%s2] sm:$0x3]
        %v226 = vlaneseq
        %v227 = vshrl.u32 %v226, 7
        %v228 = vsub.s32 0, %v227
        %v229 = vrot.slane %v224, %v228
        %v230 = vlaneseq
        %v231 = vshrl.u32 %v230, 7
        %v232 = vsub.s32 1, %v231
        %v233 = vrot.slane %v224, %v232
        %v236 = vadd.f32 %v229, %v223
        %v237 = vadd.f32 %v233, %v223
        %v238 = vmul.f32 %v209, %v236
        %v239 = vmul.f32 %v210, %v237
        %v240 = vadd.f32 %v238, %v239
        %241 = vadd.xlane.f32.xlu0 %v240
        %v242 = vpop.xlane.xlu0 %241
        %v243 = vrot.slane %v242, 4
        %v244 = vadd.f32 %v242, %v243
        %v245 = vrot.slane %v244, 2
        %v246 = vadd.f32 %v244, %v245
        %v247 = vrot.slane %v246, 1
        %v248 = vadd.f32 %v246, %v247
        %s249 = vtos %v248
        %252 = vrot.lane.b32.xlu0 %v207, 1
        %v253 = vpop.permute.xlu0 %252
        %254 = vrot.lane.b32.xlu0 %v208, 1
        %v255 = vpop.permute.xlu0 %254
        %vm256 = vcmask 7168
        %v257 = vsel %vm256, %v253, %v255
        %v260 = vsub.f32 %v207, %v253
        %v261 = vsub.f32 %v208, %v257
        %v262 = vand.u32 2147483647, %v260
        %v263 = vand.u32 2147483647, %v261
        %v264 = vld [vmem:[%s1] sm:$0x3]
        %v266 = vlaneseq
        %v267 = vshrl.u32 %v266, 7
        %v268 = vsub.s32 0, %v267
        %v269 = vrot.slane %v264, %v268
        %v270 = vlaneseq
        %v271 = vshrl.u32 %v270, 7
        %v272 = vsub.s32 1, %v271
        %v273 = vrot.slane %v264, %v272
        %274 = vrot.lane.b32.xlu0 %v269, 1
        %v275 = vpop.permute.xlu0 %274
        %276 = vrot.lane.b32.xlu0 %v273, 1
        %v277 = vpop.permute.xlu0 %276
        %v278 = vsel %vm256, %v275, %v277
        %v281 = vmul.f32 %v262, %v275
        %v282 = vmul.f32 %v263, %v278
        %285 = vrot.lane.b32.xlu0 %v281, 127
        %v286 = vpop.permute.xlu0 %285
        %287 = vrot.lane.b32.xlu0 %v282, 127
        %v288 = vpop.permute.xlu0 %287
        %vm289 = vcmask 1039360
        %v290 = vsel %vm289, %v286, %v288
        %v293 = vsel %vm289, %v288, 0.0
        %v294 = vadd.f32 %v290, %v293
        %295 = vadd.xlane.f32.xlu0 %v294
        %v296 = vpop.xlane.xlu0 %295
        %v297 = vrot.slane %v296, 4
        %v298 = vadd.f32 %v296, %v297
        %v299 = vrot.slane %v298, 2
        %v300 = vadd.f32 %v298, %v299
        %v301 = vrot.slane %v300, 1
        %v302 = vadd.f32 %v300, %v301
        %s303 = vtos %v302
        %s304 = sadd.f32 %s249, %s303
        %305 = vrot.lane.b32.xlu0 %v207, 16
        %v306 = vpop.permute.xlu0 %305
        %307 = vrot.lane.b32.xlu0 %v208, 16
        %v308 = vpop.permute.xlu0 %307
        %vm309 = vcmask 130048
        %v310 = vsel %vm309, %v306, %v308
        %v313 = vsub.f32 %v207, %v306
        %v314 = vsub.f32 %v208, %v310
        %v315 = vand.u32 2147483647, %v313
        %v316 = vand.u32 2147483647, %v314
        %319 = vrot.lane.b32.xlu0 %v315, 112
        %v320 = vpop.permute.xlu0 %319
        %321 = vrot.lane.b32.xlu0 %v316, 112
        %v322 = vpop.permute.xlu0 %321
        %vm323 = vcmask 916480
        %v324 = vsel %vm323, %v320, %v322
        %v327 = vsel %vm323, %v322, 0.0
        %v328 = vadd.f32 %v324, %v327
        %329 = vadd.xlane.f32.xlu0 %v328
        %v330 = vpop.xlane.xlu0 %329
        %v331 = vrot.slane %v330, 4
        %v332 = vadd.f32 %v330, %v331
        %v333 = vrot.slane %v332, 2
        %v334 = vadd.f32 %v332, %v333
        %v335 = vrot.slane %v334, 1
        %v336 = vadd.f32 %v334, %v335
        %s337 = vtos %v336
        %s338 = smul.f32 %s337, 0.00022977941
        %s339 = sadd.f32 %s304, %s338
        %v340 = vrot.slane %v207, 7
        %v341 = vrot.slane %v208, 7
        %v344 = vsub.f32 %v207, %v340
        %v345 = vsub.f32 %v208, %v341
        %v346 = vand.u32 2147483647, %v344
        %v347 = vand.u32 2147483647, %v345
        %v350 = vrot.slane %v346, 1
        %v351 = vrot.slane %v347, 1
        %vm354 = vcmask 1046528
        %v355 = vsel %vm354, %v350, 0.0
        %v356 = vsel %vm354, %v351, 0.0
        %v357 = vadd.f32 %v355, %v356
        %358 = vadd.xlane.f32.xlu0 %v357
        %v359 = vpop.xlane.xlu0 %358
        %v360 = vrot.slane %v359, 4
        %v361 = vadd.f32 %v359, %v360
        %v362 = vrot.slane %v361, 2
        %v363 = vadd.f32 %v361, %v362
        %v364 = vrot.slane %v363, 1
        %v365 = vadd.f32 %v363, %v364
        %s366 = vtos %v365
        %s367 = smul.f32 %s366, 0.00021701389
        %s368 = sadd.f32 %s339, %s367
        %v369 = vlaneseq
        %v370 = vand.u32 %v369, 127
        %v371 = vld [vmem:[%s201] sm:$0x1]
        %vm372 = vcmp.eq.s32.totalorder %v370, 0
        %v373 = vstv %s368
        %v374 = vsel %vm372, %v373, 0.0
        %v375 = vadd.f32 %v371, %v374
        %376 = vst [vmem:[%s201] sm:$0x1] %v375
        %s377 = sand.u32 %s110, 1
        %s378 = scalar_lea.sflag [#allocation5], %s377
        %s379 = sand.u32 %s110, 1
        %s380 = scalar_lea.vmem [#allocation6], %s379
        // Predicated region
        $region41: #{tpu_custom_call.1} parent=31 // pred_check
          %p381 = pneg %p120
        $region42: #{tpu_custom_call.1} parent=31 // pred_check_branch
          %383 = sbr.rel (%p381) target = $region44
        $region43: #{tpu_custom_call.1} parent=31 // pred_region
          %s385 = ssub.s32 16, 16
          %386 = vsyncadd %s378, %s385
          %s387 = smul.addr %s24, 16
          %s388 = scalar_lea.hbm %s3, %s387
          %s390 = sshll.u32 %s380, 4
          %s391 = int_to_ptr.vmem [resolvable:$true] %s390
          %393 = dma.vmem_to_hbm [thread:$0]  %s391, 16, %s388, %s378
        $region44: #{tpu_custom_call.1} parent=31 // pred_fallthru
          _
      $region32: #{tpu_custom_call.1} parent=5 // pred_fallthru
        _
      %p394 = scmp.le.s32.totalorder 2, %s15
      // Predicated region
      $region45: #{tpu_custom_call.1} parent=5 // pred_check
        %p395 = pneg %p394
      $region46: #{tpu_custom_call.1} parent=5 // pred_check_branch
        %397 = sbr.rel (%p395) target = $region48
      $region47: #{tpu_custom_call.1} parent=5 // pred_region
        %s398 = ssub.s32 %s15, 2
        // Predicated region
        $region49: #{tpu_custom_call.1} parent=47 // pred_check
          %p399 = pneg %p126
        $region50: #{tpu_custom_call.1} parent=47 // pred_check_branch
          %401 = sbr.rel (%p399) target = $region52
        $region51: #{tpu_custom_call.1} parent=47 // pred_region
          %s402 = sand.u32 %s111, 1
          %s403 = scalar_lea.sflag [#allocation5], %s402
          %s404 = sand.u32 %s111, 1
          %s405 = scalar_lea.vmem [#allocation6], %s404
          %406 = dma.done %s403, 16
        $region52: #{tpu_custom_call.1} parent=47 // pred_fallthru
          _
      $region48: #{tpu_custom_call.1} parent=5 // pred_fallthru
        _
    $region6: #{tpu_custom_call.1} parent=1 // loop_footer
      %s19 = sadd.s32 1, %s15
    $region7: #{tpu_custom_call.1} parent=1 // loop_footer_branch
      %14 = sbr.rel target = $region3
    $region8: #{tpu_custom_call.1} parent=1 // loop_exit
      _
    %407 = vsyncpa [#allocation4], 1
    %s408 = scalar_lea.sflag [#allocation4], 1
    %409 = vsyncpa %s408, 1
    %410 = vsyncpa [#allocation5], 1
    %s411 = scalar_lea.sflag [#allocation5], 1
    %412 = vsyncpa %s411, 1

</llo_original>
